<compile_context>
chip_gen: v7x
topology: tpu7x:2x2x1
jax: 0.10.0
libtpu: 0.0.40
codegen_flags: <defaults>
</compile_context>

<pallas_src>
import jax
import jax.numpy as jnp
from jax.experimental import pallas as pl
from jax.experimental.pallas import tpu as pltpu


_LANE = 128
_SMALL_OUTPUT_BYTES = 1 << 20      # below this, pallas_call overhead dominates
_MEGACORE_SPLIT_BYTES = 1 << 20    # force >=2 grid steps above this (v7x TCs)


def _fill_kernel(param_ref, o_ref):
    # param_ref: SMEM (1,) f32 -- the "unused" scalar parameter (init 0.0)
    # o_ref:     VMEM (tile_rows, cols) f32 -- one lane-dense output tile
    o_ref[...] = jnp.full(o_ref.shape, param_ref[0], o_ref.dtype)


def _round_up(x: int, m: int) -> int:
    return -(-x // m) * m


def _tile_budget_bytes() -> int:
    """Per-tile byte budget (pipeline double-buffers => 2x this in VMEM)."""
    kind = ""
    try:
        kind = jax.devices()[0].device_kind.lower()
    except Exception:
        pass
    if "v6" in kind:
        # 8 MiB tile -> 16 MiB double-buffered, under v6e's 32 MiB scoped default.
        return 8 << 20
    # Conservative default: fits v5e's 16 MiB scoped default and keeps v7x
    # (64 MiB physical, two TCs each double-buffering) well clear of limits.
    return 4 << 20


def _choose_slab(total: int):
    """Lane-dense (rows, cols, pad) factorization of `total` f32 elements.

    cols is always a multiple of 128 so output stores are unmasked full-lane
    vst.  If no multiple-of-128 divisor of `total` exists, the flat length is
    padded up; the pad is filled and sliced off by the wrapper.
    """
    for cols in (32768, 16384, 8192, 4096, 2048, 1024, 512, 256, 128):
        if total % cols == 0:
            return total // cols, cols, 0
    cols = 8192 if total >= 8192 else _round_up(total, _LANE)
    rows = -(-total // cols)
    return rows, cols, rows * cols - total


def _choose_tile_rows(rows: int, cols: int, budget_bytes: int) -> int:
    """Biggest row-tile within the byte budget, preferring a divisor of rows."""
    row_bytes = cols * 4
    total_bytes = rows * row_bytes
    max_rows = max(1, budget_bytes // row_bytes)
    # Guarantee >=2 grid steps for non-trivial outputs so v7x's two
    # TensorCores both get work ("parallel" does nothing on a 1-step grid).
    if total_bytes > _MEGACORE_SPLIT_BYTES and rows > 8:
        max_rows = min(max_rows, -(-rows // 2))
    if rows <= max_rows:
        return rows  # single full tile (block == full dims is always legal)
    # Prefer the largest multiple-of-8 divisor of rows: no masked edge tile.
    t = (max_rows // 8) * 8
    while t >= 8:
        if rows % t == 0:
            return t
        t -= 8
    # Fall back to the largest multiple of 8 within budget (edge tile masked
    # by Pallas on the output write).
    return max(8, (max_rows // 8) * 8)


def return_zeros_forward(x_shape, param, n_out_channels):
    """x_shape: (B, C_in, H, W).  Returns (B, C_out, H, W) f32 = 0 + param."""
    b, _, h, w = x_shape
    out_shape = (b, n_out_channels, h, w)
    total = b * n_out_channels * h * w

    # Small-output bypass: kernel launch + pipeline prologue dwarf the fill.
    if total * 4 <= _SMALL_OUTPUT_BYTES:
        return jnp.zeros(out_shape, jnp.float32) + param[0]

    rows, cols, pad = _choose_slab(total)
    tile_rows = _choose_tile_rows(rows, cols, _tile_budget_bytes())
    grid = (pl.cdiv(rows, tile_rows),)

    slab = pl.pallas_call(
        _fill_kernel,
        out_shape=jax.ShapeDtypeStruct((rows, cols), jnp.float32),
        grid=grid,
        in_specs=[
            # Scalar parameter lives in SMEM; passed whole every grid step.
            pl.BlockSpec(memory_space=pltpu.MemorySpace.SMEM),
        ],
        out_specs=pl.BlockSpec((tile_rows, cols), lambda i: (i, 0)),
        compiler_params=pltpu.CompilerParams(
            dimension_semantics=("parallel",),  # independent tiles; megacore
        ),
        cost_estimate=pl.CostEstimate(
            flops=0, transcendentals=0, bytes_accessed=rows * cols * 4
        ),
    )(param)

    if pad:
        return slab.reshape(-1)[:total].reshape(out_shape)
    return slab.reshape(out_shape)


class ReturnZerosModuleJAX:
    """JAX/Pallas port of ReturnZerosModule."""

    def __init__(self, n_in_channels: int, n_out_channels: int):
        self.n_in_channels = n_in_channels
        self.n_out_channels = n_out_channels
        # Deterministic init, identical to torch.tensor(0.0)
        self.param = jnp.zeros((1,), dtype=jnp.float32)

    def __call__(self, x):
        assert x.shape[1] == self.n_in_channels
        # Dispatch the NaN reduce device-side first, then the fill kernel, and
        # only afterwards sync on the flag: the reduce over x overlaps the
        # zero-fill instead of blocking its dispatch with a host round-trip.
        # TODO(synk): under jax.jit this eager assert would need checkify.
        nan_flag = jnp.any(jnp.isnan(x))
        out = return_zeros_forward(x.shape, self.param, self.n_out_channels)
        assert not bool(nan_flag), "NaN found in input x"
        return out


if __name__ == "__main__":
    key = jax.random.PRNGKey(0)
    B, C_IN, C_OUT, H, W = 2, 4, 6, 16, 16

    module = ReturnZerosModuleJAX(C_IN, C_OUT)

    # Small case (matches the PyTorch test shapes): uses the broadcast bypass.
    x_small = jax.random.normal(key, (B, C_IN, H, W), dtype=jnp.float32)
    out_small = jax.block_until_ready(module(x_small))
    assert out_small.shape == (B, C_OUT, H, W), out_small.shape
    assert out_small.dtype == jnp.float32, out_small.dtype
    assert bool(jnp.all(out_small == 0.0)), "expected all zeros (param is 0.0)"

    # Larger spatial case (>1 MiB output) exercises the Pallas fill kernel,
    # including the tiled grid and a masked edge tile.
    H2, W2 = 180, 360
    x_big = jax.random.normal(key, (B, C_IN, H2, W2), dtype=jnp.float32)
    out_big = jax.block_until_ready(module(x_big))
    assert out_big.shape == (B, C_OUT, H2, W2), out_big.shape
    assert out_big.dtype == jnp.float32, out_big.dtype
    assert bool(jnp.all(out_big == 0.0)), "expected all zeros (param is 0.0)"

    print("KERNEL_OK")
</pallas_src>

<mosaic_0001>
module attributes {stable_mosaic.version = 11 : i64} {
  func.func @_fill_kernel(%arg0: i32, %arg1: memref<1xf32, #tpu.memory_space<smem>>, %arg2: memref<3032x128xf32, #tpu.memory_space<vmem>>) attributes {dimension_semantics = [#tpu.dimension_semantics<parallel>], iteration_bounds = array<i64: 3>, scalar_prefetch = 0 : i64, scratch_operands = 0 : i64, tpu.core_type = #tpu.core_type<tc>, window_params = [{transform_indices = @transform_0, window_bounds = array<i64: 1>}, {transform_indices = @transform_1, window_bounds = array<i64: 3032, 128>}]} {
    %c0 = arith.constant 0 : index
    %0 = memref.load %arg1[%c0] : memref<1xf32, #tpu.memory_space<smem>>
    %1 = vector.broadcast %0 : f32 to vector<3032x128xf32>
    %c0_0 = arith.constant 0 : index
    %c0_1 = arith.constant 0 : index
    %2 = vector.load %arg2[%c0_0, %c0_1] : memref<3032x128xf32, #tpu.memory_space<vmem>>, vector<3032x128xf32>
    tpu.vector_store %arg2[%c0_0, %c0_1], %1 {strides = array<i32>} : memref<3032x128xf32, #tpu.memory_space<vmem>>, vector<3032x128xf32>,
    return
  }
  func.func @transform_0(%arg0: i32) -> i32 {
    %c0_i32 = arith.constant 0 : i32
    %c0_i32_0 = arith.constant 0 : i32
    return %c0_i32 : i32
  }
  func.func @transform_1(%arg0: i32) -> (i32, i32) {
    %c0_i32 = arith.constant 0 : i32
    %c0_i32_0 = arith.constant 0 : i32
    return %arg0, %c0_i32 : i32, i32
  }
}

</mosaic_0001>

<llo_original>
// kernel: tpu_custom_call.1
$region0: #{tpu_custom_call.1}
  #allocation0 [shape = 'u32[]', space=smem, size = 0x4, offset = 0x4, fixed_abs, tag = 'smem constant byte address 0x4 - core index']
  #allocation1 [shape = 'u32[144,128]{1,0:T(1,128)}', space=vmem, size = 0x12000, scoped, tag = 'internal scratch']
  #allocation2 [shape = 'f32[1]{0:T(128)S(6)}', space=smem, size = 0x200, scoped, tag = 'scoped memory for tpu_custom_call.1']
  %s0 = inlined_call_operand.<no memory space> [shape: f32[1], index: 0, kind: input, shape index: {}]
  %s1 = inlined_call_operand.hbm [shape: f32[6075,128], index: 1, kind: output, shape index: {}]
  %s2 = sld [smem:[#allocation0]]
  $region37: #{tpu_custom_call.1} parent=0
    _
  %s4 = ssub.s32 1, %s2
  %s5 = scalar_select 0, %s4, %s2
  %6 = sst [smem:[#allocation2]] %s0
  $region1: #{tpu_custom_call.1} parent=0
    #allocation3 [shape = 'u8[3104768]{0}', space=vmem, size = 0x2f6000, scoped, tag = 'output window, operand 0']
    #allocation4 [shape = 's32[2]{0}', space=sflag, size = 0x8, scoped, tag = 'scoped memory for tpu_custom_call.1']
    %7 = vsyncpa [#allocation4], 0
    %s8 = scalar_lea.sflag [#allocation4], 1
    %9 = vsyncpa %s8, 0
    loop: start=0, step=1, limit=5
    $region2: #{tpu_custom_call.1} parent=1 // loop_pre_header
      _
    $region3: #{tpu_custom_call.1} parent=1 // loop_header
      %s11 = sphi 0, %s15
      %p12 = scmp.ge.s32.totalorder %s11, 5
      %s19 = sphi 0, %s19
      %s21 = sphi 0, %s19
      %s22 = sphi 0, %s21
      %s36 = sphi 0, %s22
      %s42 = sphi 0, %s44
      %s45 = sphi 0, %s42
      %s46 = sphi 0, %s45
      %s62 = sphi 0, %s46
    $region4: #{tpu_custom_call.1} parent=1 // loop_header_branch
      %14 = sbr.rel (%p12) target = $region8
    $region5: #{tpu_custom_call.1} parent=1 // loop_body
      %s16 = ssub.s32 %s11, 1
      %s17 = ssub.s32 %s11, 2
      %s18 = sadd.s32 %s11, 1
      %s20 = sadd.s32 %s19, 1
      %p23 = scmp.eq.s32.totalorder %s11, 2
      %p24 = scmp.ne.s32.totalorder %s19, %s21
      %p25 = scmp.eq.s32.totalorder %s11, 0
      %p26 = por %p24, %p25
      %p27 = scmp.ne.s32.totalorder %s19, %s21
      %p28 = scmp.eq.s32.totalorder %s16, 2
      %p29 = por %p27, %p28
      %p30 = scmp.ne.s32.totalorder %s21, %s22
      %p31 = scmp.eq.s32.totalorder %s16, 0
      %p32 = por %p30, %p31
      %p33 = scmp.ne.s32.totalorder %s21, %s22
      %p34 = scmp.eq.s32.totalorder %s17, 2
      %p35 = por %p33, %p34
      %p37 = scmp.ne.s32.totalorder %s22, %s36
      %p38 = scmp.eq.s32.totalorder %s17, 0
      %p39 = por %p37, %p38
      %s40 = ssub.s32 %s11, %s18
      %p41 = scmp.eq.s32.totalorder %s40, 0
      %s43 = sadd.s32 %s42, 1
      %s44 = scalar_select %p41, %s42, %s43
      %p47 = pneg %p41
      %p48 = scmp.eq.s32.totalorder %s11, 2
      %p49 = por %p47, %p48
      %p50 = scmp.ne.s32.totalorder %s42, %s45
      %p51 = scmp.eq.s32.totalorder %s11, 0
      %p52 = por %p50, %p51
      %p53 = scmp.ne.s32.totalorder %s42, %s45
      %p54 = scmp.eq.s32.totalorder %s16, 2
      %p55 = por %p53, %p54
      %p56 = scmp.ne.s32.totalorder %s45, %s46
      %p57 = scmp.eq.s32.totalorder %s16, 0
      %p58 = por %p56, %p57
      %p59 = scmp.ne.s32.totalorder %s45, %s46
      %p60 = scmp.eq.s32.totalorder %s17, 2
      %p61 = por %p59, %p60
      %p63 = scmp.ne.s32.totalorder %s46, %s62
      %p64 = scmp.eq.s32.totalorder %s17, 0
      %p65 = por %p63, %p64
      %p66 = scmp.le.s32.totalorder 1, %s11
      %p67 = scmp.lt.s32.totalorder %s11, 4
      %p68 = pnand %p66, %p67
      %p69 = pneg %p68
      // Predicated region
      $region9: #{tpu_custom_call.1} parent=5 // pred_check
        _
      $region10: #{tpu_custom_call.1} parent=5 // pred_check_branch
        %71 = sbr.rel (%p68) target = $region12
      $region11: #{tpu_custom_call.1} parent=5 // pred_region
        %s72 = ssub.s32 %s11, 1
        // Predicated region
        $region13: #{tpu_custom_call.1} parent=11 // pred_check
          %p73 = pneg %p32
        $region14: #{tpu_custom_call.1} parent=11 // pred_check_branch
          %75 = sbr.rel (%p73) target = $region16
        $region15: #{tpu_custom_call.1} parent=11 // pred_region
          _
        $region16: #{tpu_custom_call.1} parent=11 // pred_fallthru
          _
      $region12: #{tpu_custom_call.1} parent=5 // pred_fallthru
        _
      %p76 = scmp.lt.s32.totalorder %s11, 3
      // Predicated region
      $region17: #{tpu_custom_call.1} parent=5 // pred_check
        %p77 = pneg %p76
      $region18: #{tpu_custom_call.1} parent=5 // pred_check_branch
        %79 = sbr.rel (%p77) target = $region20
      $region19: #{tpu_custom_call.1} parent=5 // pred_region
        _
      $region20: #{tpu_custom_call.1} parent=5 // pred_fallthru
        _
      %p80 = scmp.le.s32.totalorder 1, %s11
      %p81 = scmp.lt.s32.totalorder %s11, 4
      %p82 = pnand %p80, %p81
      %p83 = pneg %p82
      // Predicated region
      $region21: #{tpu_custom_call.1} parent=5 // pred_check
        _
      $region22: #{tpu_custom_call.1} parent=5 // pred_check_branch
        %85 = sbr.rel (%p82) target = $region24
      $region23: #{tpu_custom_call.1} parent=5 // pred_region
        %s86 = ssub.s32 %s11, 1
        %p87 = pneg %p32
        %p88 = pneg %p29
        %p89 = pneg %p58
        %p90 = pneg %p55
        %s91 = sand.u32 %s45, 1
        %s92 = scalar_lea.sflag [#allocation4], %s91
        %s93 = sand.u32 %s45, 1
        %s94 = smul.addr %s93, 3032
        %s95 = scalar_lea.vmem [#allocation3], %s94
        %s96 = smul.u32 379, %s16
        %s97 = ssub.s32 760, %s96
        %p98 = scmp.lt.s32.totalorder %s97, 379
        %s99 = scalar_select %p98, %s97, 379
        %s100 = smul.u32 128, %s99
        %s101 = sld [smem:[#allocation2]]
        %v102 = vstv %s101
        %103 = vst [vmem:[%s95] sm:$0xff] %v102
        %104 = vst [vmem:[%s95 + $0x8] sm:$0xff] %v102
        %105 = vst [vmem:[%s95 + $0x10] sm:$0xff] %v102
        %106 = vst [vmem:[%s95 + $0x18] sm:$0xff] %v102
        %107 = vst [vmem:[%s95 + $0x20] sm:$0xff] %v102
        %108 = vst [vmem:[%s95 + $0x28] sm:$0xff] %v102
        %109 = vst [vmem:[%s95 + $0x30] sm:$0xff] %v102
        %110 = vst [vmem:[%s95 + $0x38] sm:$0xff] %v102
        %111 = vst [vmem:[%s95 + $0x40] sm:$0xff] %v102
        %112 = vst [vmem:[%s95 + $0x48] sm:$0xff] %v102
        %113 = vst [vmem:[%s95 + $0x50] sm:$0xff] %v102
        %114 = vst [vmem:[%s95 + $0x58] sm:$0xff] %v102
        %115 = vst [vmem:[%s95 + $0x60] sm:$0xff] %v102
        %116 = vst [vmem:[%s95 + $0x68] sm:$0xff] %v102
        %117 = vst [vmem:[%s95 + $0x70] sm:$0xff] %v102
        %118 = vst [vmem:[%s95 + $0x78] sm:$0xff] %v102
        %119 = vst [vmem:[%s95 + $0x80] sm:$0xff] %v102
        %120 = vst [vmem:[%s95 + $0x88] sm:$0xff] %v102
        %121 = vst [vmem:[%s95 + $0x90] sm:$0xff] %v102
        %122 = vst [vmem:[%s95 + $0x98] sm:$0xff] %v102
        %123 = vst [vmem:[%s95 + $0xa0] sm:$0xff] %v102
        %124 = vst [vmem:[%s95 + $0xa8] sm:$0xff] %v102
        %125 = vst [vmem:[%s95 + $0xb0] sm:$0xff] %v102
        %126 = vst [vmem:[%s95 + $0xb8] sm:$0xff] %v102
        %127 = vst [vmem:[%s95 + $0xc0] sm:$0xff] %v102
        %128 = vst [vmem:[%s95 + $0xc8] sm:$0xff] %v102
        %129 = vst [vmem:[%s95 + $0xd0] sm:$0xff] %v102
        %130 = vst [vmem:[%s95 + $0xd8] sm:$0xff] %v102
        %131 = vst [vmem:[%s95 + $0xe0] sm:$0xff] %v102
        %132 = vst [vmem:[%s95 + $0xe8] sm:$0xff] %v102
        %133 = vst [vmem:[%s95 + $0xf0] sm:$0xff] %v102
        %134 = vst [vmem:[%s95 + $0xf8] sm:$0xff] %v102
        %135 = vst [vmem:[%s95 + $0x100] sm:$0xff] %v102
        %136 = vst [vmem:[%s95 + $0x108] sm:$0xff] %v102
        %137 = vst [vmem:[%s95 + $0x110] sm:$0xff] %v102
        %138 = vst [vmem:[%s95 + $0x118] sm:$0xff] %v102
        %139 = vst [vmem:[%s95 + $0x120] sm:$0xff] %v102
        %140 = vst [vmem:[%s95 + $0x128] sm:$0xff] %v102
        %141 = vst [vmem:[%s95 + $0x130] sm:$0xff] %v102
        %142 = vst [vmem:[%s95 + $0x138] sm:$0xff] %v102
        %143 = vst [vmem:[%s95 + $0x140] sm:$0xff] %v102
        %144 = vst [vmem:[%s95 + $0x148] sm:$0xff] %v102
        %145 = vst [vmem:[%s95 + $0x150] sm:$0xff] %v102
        %146 = vst [vmem:[%s95 + $0x158] sm:$0xff] %v102
        %147 = vst [vmem:[%s95 + $0x160] sm:$0xff] %v102
        %148 = vst [vmem:[%s95 + $0x168] sm:$0xff] %v102
        %149 = vst [vmem:[%s95 + $0x170] sm:$0xff] %v102
        %150 = vst [vmem:[%s95 + $0x178] sm:$0xff] %v102
        %151 = vst [vmem:[%s95 + $0x180] sm:$0xff] %v102
        %152 = vst [vmem:[%s95 + $0x188] sm:$0xff] %v102
        %153 = vst [vmem:[%s95 + $0x190] sm:$0xff] %v102
        %154 = vst [vmem:[%s95 + $0x198] sm:$0xff] %v102
        %155 = vst [vmem:[%s95 + $0x1a0] sm:$0xff] %v102
        %156 = vst [vmem:[%s95 + $0x1a8] sm:$0xff] %v102
        %157 = vst [vmem:[%s95 + $0x1b0] sm:$0xff] %v102
        %158 = vst [vmem:[%s95 + $0x1b8] sm:$0xff] %v102
        %159 = vst [vmem:[%s95 + $0x1c0] sm:$0xff] %v102
        %160 = vst [vmem:[%s95 + $0x1c8] sm:$0xff] %v102
        %161 = vst [vmem:[%s95 + $0x1d0] sm:$0xff] %v102
        %162 = vst [vmem:[%s95 + $0x1d8] sm:$0xff] %v102
        %163 = vst [vmem:[%s95 + $0x1e0] sm:$0xff] %v102
        %164 = vst [vmem:[%s95 + $0x1e8] sm:$0xff] %v102
        %165 = vst [vmem:[%s95 + $0x1f0] sm:$0xff] %v102
        %166 = vst [vmem:[%s95 + $0x1f8] sm:$0xff] %v102
        %167 = vst [vmem:[%s95 + $0x200] sm:$0xff] %v102
        %168 = vst [vmem:[%s95 + $0x208] sm:$0xff] %v102
        %169 = vst [vmem:[%s95 + $0x210] sm:$0xff] %v102
        %170 = vst [vmem:[%s95 + $0x218] sm:$0xff] %v102
        %171 = vst [vmem:[%s95 + $0x220] sm:$0xff] %v102
        %172 = vst [vmem:[%s95 + $0x228] sm:$0xff] %v102
        %173 = vst [vmem:[%s95 + $0x230] sm:$0xff] %v102
        %174 = vst [vmem:[%s95 + $0x238] sm:$0xff] %v102
        %175 = vst [vmem:[%s95 + $0x240] sm:$0xff] %v102
        %176 = vst [vmem:[%s95 + $0x248] sm:$0xff] %v102
        %177 = vst [vmem:[%s95 + $0x250] sm:$0xff] %v102
        %178 = vst [vmem:[%s95 + $0x258] sm:$0xff] %v102
        %179 = vst [vmem:[%s95 + $0x260] sm:$0xff] %v102
        %180 = vst [vmem:[%s95 + $0x268] sm:$0xff] %v102
        %181 = vst [vmem:[%s95 + $0x270] sm:$0xff] %v102
        %182 = vst [vmem:[%s95 + $0x278] sm:$0xff] %v102
        %183 = vst [vmem:[%s95 + $0x280] sm:$0xff] %v102
        %184 = vst [vmem:[%s95 + $0x288] sm:$0xff] %v102
        %185 = vst [vmem:[%s95 + $0x290] sm:$0xff] %v102
        %186 = vst [vmem:[%s95 + $0x298] sm:$0xff] %v102
        %187 = vst [vmem:[%s95 + $0x2a0] sm:$0xff] %v102
        %188 = vst [vmem:[%s95 + $0x2a8] sm:$0xff] %v102
        %189 = vst [vmem:[%s95 + $0x2b0] sm:$0xff] %v102
        %190 = vst [vmem:[%s95 + $0x2b8] sm:$0xff] %v102
        %191 = vst [vmem:[%s95 + $0x2c0] sm:$0xff] %v102
        %192 = vst [vmem:[%s95 + $0x2c8] sm:$0xff] %v102
        %193 = vst [vmem:[%s95 + $0x2d0] sm:$0xff] %v102
        %194 = vst [vmem:[%s95 + $0x2d8] sm:$0xff] %v102
        %195 = vst [vmem:[%s95 + $0x2e0] sm:$0xff] %v102
        %196 = vst [vmem:[%s95 + $0x2e8] sm:$0xff] %v102
        %197 = vst [vmem:[%s95 + $0x2f0] sm:$0xff] %v102
        %198 = vst [vmem:[%s95 + $0x2f8] sm:$0xff] %v102
        %199 = vst [vmem:[%s95 + $0x300] sm:$0xff] %v102
        %200 = vst [vmem:[%s95 + $0x308] sm:$0xff] %v102
        %201 = vst [vmem:[%s95 + $0x310] sm:$0xff] %v102
        %202 = vst [vmem:[%s95 + $0x318] sm:$0xff] %v102
        %203 = vst [vmem:[%s95 + $0x320] sm:$0xff] %v102
        %204 = vst [vmem:[%s95 + $0x328] sm:$0xff] %v102
        %205 = vst [vmem:[%s95 + $0x330] sm:$0xff] %v102
        %206 = vst [vmem:[%s95 + $0x338] sm:$0xff] %v102
        %207 = vst [vmem:[%s95 + $0x340] sm:$0xff] %v102
        %208 = vst [vmem:[%s95 + $0x348] sm:$0xff] %v102
        %209 = vst [vmem:[%s95 + $0x350] sm:$0xff] %v102
        %210 = vst [vmem:[%s95 + $0x358] sm:$0xff] %v102
        %211 = vst [vmem:[%s95 + $0x360] sm:$0xff] %v102
        %212 = vst [vmem:[%s95 + $0x368] sm:$0xff] %v102
        %213 = vst [vmem:[%s95 + $0x370] sm:$0xff] %v102
        %214 = vst [vmem:[%s95 + $0x378] sm:$0xff] %v102
        %215 = vst [vmem:[%s95 + $0x380] sm:$0xff] %v102
        %216 = vst [vmem:[%s95 + $0x388] sm:$0xff] %v102
        %217 = vst [vmem:[%s95 + $0x390] sm:$0xff] %v102
        %218 = vst [vmem:[%s95 + $0x398] sm:$0xff] %v102
        %219 = vst [vmem:[%s95 + $0x3a0] sm:$0xff] %v102
        %220 = vst [vmem:[%s95 + $0x3a8] sm:$0xff] %v102
        %221 = vst [vmem:[%s95 + $0x3b0] sm:$0xff] %v102
        %222 = vst [vmem:[%s95 + $0x3b8] sm:$0xff] %v102
        %223 = vst [vmem:[%s95 + $0x3c0] sm:$0xff] %v102
        %224 = vst [vmem:[%s95 + $0x3c8] sm:$0xff] %v102
        %225 = vst [vmem:[%s95 + $0x3d0] sm:$0xff] %v102
        %226 = vst [vmem:[%s95 + $0x3d8] sm:$0xff] %v102
        %227 = vst [vmem:[%s95 + $0x3e0] sm:$0xff] %v102
        %228 = vst [vmem:[%s95 + $0x3e8] sm:$0xff] %v102
        %229 = vst [vmem:[%s95 + $0x3f0] sm:$0xff] %v102
        %230 = vst [vmem:[%s95 + $0x3f8] sm:$0xff] %v102
        %231 = vst [vmem:[%s95 + $0x400] sm:$0xff] %v102
        %232 = vst [vmem:[%s95 + $0x408] sm:$0xff] %v102
        %233 = vst [vmem:[%s95 + $0x410] sm:$0xff] %v102
        %234 = vst [vmem:[%s95 + $0x418] sm:$0xff] %v102
        %235 = vst [vmem:[%s95 + $0x420] sm:$0xff] %v102
        %236 = vst [vmem:[%s95 + $0x428] sm:$0xff] %v102
        %237 = vst [vmem:[%s95 + $0x430] sm:$0xff] %v102
        %238 = vst [vmem:[%s95 + $0x438] sm:$0xff] %v102
        %239 = vst [vmem:[%s95 + $0x440] sm:$0xff] %v102
        %240 = vst [vmem:[%s95 + $0x448] sm:$0xff] %v102
        %241 = vst [vmem:[%s95 + $0x450] sm:$0xff] %v102
        %242 = vst [vmem:[%s95 + $0x458] sm:$0xff] %v102
        %243 = vst [vmem:[%s95 + $0x460] sm:$0xff] %v102
        %244 = vst [vmem:[%s95 + $0x468] sm:$0xff] %v102
        %245 = vst [vmem:[%s95 + $0x470] sm:$0xff] %v102
        %246 = vst [vmem:[%s95 + $0x478] sm:$0xff] %v102
        %247 = vst [vmem:[%s95 + $0x480] sm:$0xff] %v102
        %248 = vst [vmem:[%s95 + $0x488] sm:$0xff] %v102
        %249 = vst [vmem:[%s95 + $0x490] sm:$0xff] %v102
        %250 = vst [vmem:[%s95 + $0x498] sm:$0xff] %v102
        %251 = vst [vmem:[%s95 + $0x4a0] sm:$0xff] %v102
        %252 = vst [vmem:[%s95 + $0x4a8] sm:$0xff] %v102
        %253 = vst [vmem:[%s95 + $0x4b0] sm:$0xff] %v102
        %254 = vst [vmem:[%s95 + $0x4b8] sm:$0xff] %v102
        %255 = vst [vmem:[%s95 + $0x4c0] sm:$0xff] %v102
        %256 = vst [vmem:[%s95 + $0x4c8] sm:$0xff] %v102
        %257 = vst [vmem:[%s95 + $0x4d0] sm:$0xff] %v102
        %258 = vst [vmem:[%s95 + $0x4d8] sm:$0xff] %v102
        %259 = vst [vmem:[%s95 + $0x4e0] sm:$0xff] %v102
        %260 = vst [vmem:[%s95 + $0x4e8] sm:$0xff] %v102
        %261 = vst [vmem:[%s95 + $0x4f0] sm:$0xff] %v102
        %262 = vst [vmem:[%s95 + $0x4f8] sm:$0xff] %v102
        %263 = vst [vmem:[%s95 + $0x500] sm:$0xff] %v102
        %264 = vst [vmem:[%s95 + $0x508] sm:$0xff] %v102
        %265 = vst [vmem:[%s95 + $0x510] sm:$0xff] %v102
        %266 = vst [vmem:[%s95 + $0x518] sm:$0xff] %v102
        %267 = vst [vmem:[%s95 + $0x520] sm:$0xff] %v102
        %268 = vst [vmem:[%s95 + $0x528] sm:$0xff] %v102
        %269 = vst [vmem:[%s95 + $0x530] sm:$0xff] %v102
        %270 = vst [vmem:[%s95 + $0x538] sm:$0xff] %v102
        %271 = vst [vmem:[%s95 + $0x540] sm:$0xff] %v102
        %272 = vst [vmem:[%s95 + $0x548] sm:$0xff] %v102
        %273 = vst [vmem:[%s95 + $0x550] sm:$0xff] %v102
        %274 = vst [vmem:[%s95 + $0x558] sm:$0xff] %v102
        %275 = vst [vmem:[%s95 + $0x560] sm:$0xff] %v102
        %276 = vst [vmem:[%s95 + $0x568] sm:$0xff] %v102
        %277 = vst [vmem:[%s95 + $0x570] sm:$0xff] %v102
        %278 = vst [vmem:[%s95 + $0x578] sm:$0xff] %v102
        %279 = vst [vmem:[%s95 + $0x580] sm:$0xff] %v102
        %280 = vst [vmem:[%s95 + $0x588] sm:$0xff] %v102
        %281 = vst [vmem:[%s95 + $0x590] sm:$0xff] %v102
        %282 = vst [vmem:[%s95 + $0x598] sm:$0xff] %v102
        %283 = vst [vmem:[%s95 + $0x5a0] sm:$0xff] %v102
        %284 = vst [vmem:[%s95 + $0x5a8] sm:$0xff] %v102
        %285 = vst [vmem:[%s95 + $0x5b0] sm:$0xff] %v102
        %286 = vst [vmem:[%s95 + $0x5b8] sm:$0xff] %v102
        %287 = vst [vmem:[%s95 + $0x5c0] sm:$0xff] %v102
        %288 = vst [vmem:[%s95 + $0x5c8] sm:$0xff] %v102
        %289 = vst [vmem:[%s95 + $0x5d0] sm:$0xff] %v102
        %290 = vst [vmem:[%s95 + $0x5d8] sm:$0xff] %v102
        %291 = vst [vmem:[%s95 + $0x5e0] sm:$0xff] %v102
        %292 = vst [vmem:[%s95 + $0x5e8] sm:$0xff] %v102
        %293 = vst [vmem:[%s95 + $0x5f0] sm:$0xff] %v102
        %294 = vst [vmem:[%s95 + $0x5f8] sm:$0xff] %v102
        %295 = vst [vmem:[%s95 + $0x600] sm:$0xff] %v102
        %296 = vst [vmem:[%s95 + $0x608] sm:$0xff] %v102
        %297 = vst [vmem:[%s95 + $0x610] sm:$0xff] %v102
        %298 = vst [vmem:[%s95 + $0x618] sm:$0xff] %v102
        %299 = vst [vmem:[%s95 + $0x620] sm:$0xff] %v102
        %300 = vst [vmem:[%s95 + $0x628] sm:$0xff] %v102
        %301 = vst [vmem:[%s95 + $0x630] sm:$0xff] %v102
        %302 = vst [vmem:[%s95 + $0x638] sm:$0xff] %v102
        %303 = vst [vmem:[%s95 + $0x640] sm:$0xff] %v102
        %304 = vst [vmem:[%s95 + $0x648] sm:$0xff] %v102
        %305 = vst [vmem:[%s95 + $0x650] sm:$0xff] %v102
        %306 = vst [vmem:[%s95 + $0x658] sm:$0xff] %v102
        %307 = vst [vmem:[%s95 + $0x660] sm:$0xff] %v102
        %308 = vst [vmem:[%s95 + $0x668] sm:$0xff] %v102
        %309 = vst [vmem:[%s95 + $0x670] sm:$0xff] %v102
        %310 = vst [vmem:[%s95 + $0x678] sm:$0xff] %v102
        %311 = vst [vmem:[%s95 + $0x680] sm:$0xff] %v102
        %312 = vst [vmem:[%s95 + $0x688] sm:$0xff] %v102
        %313 = vst [vmem:[%s95 + $0x690] sm:$0xff] %v102
        %314 = vst [vmem:[%s95 + $0x698] sm:$0xff] %v102
        %315 = vst [vmem:[%s95 + $0x6a0] sm:$0xff] %v102
        %316 = vst [vmem:[%s95 + $0x6a8] sm:$0xff] %v102
        %317 = vst [vmem:[%s95 + $0x6b0] sm:$0xff] %v102
        %318 = vst [vmem:[%s95 + $0x6b8] sm:$0xff] %v102
        %319 = vst [vmem:[%s95 + $0x6c0] sm:$0xff] %v102
        %320 = vst [vmem:[%s95 + $0x6c8] sm:$0xff] %v102
        %321 = vst [vmem:[%s95 + $0x6d0] sm:$0xff] %v102
        %322 = vst [vmem:[%s95 + $0x6d8] sm:$0xff] %v102
        %323 = vst [vmem:[%s95 + $0x6e0] sm:$0xff] %v102
        %324 = vst [vmem:[%s95 + $0x6e8] sm:$0xff] %v102
        %325 = vst [vmem:[%s95 + $0x6f0] sm:$0xff] %v102
        %326 = vst [vmem:[%s95 + $0x6f8] sm:$0xff] %v102
        %327 = vst [vmem:[%s95 + $0x700] sm:$0xff] %v102
        %328 = vst [vmem:[%s95 + $0x708] sm:$0xff] %v102
        %329 = vst [vmem:[%s95 + $0x710] sm:$0xff] %v102
        %330 = vst [vmem:[%s95 + $0x718] sm:$0xff] %v102
        %331 = vst [vmem:[%s95 + $0x720] sm:$0xff] %v102
        %332 = vst [vmem:[%s95 + $0x728] sm:$0xff] %v102
        %333 = vst [vmem:[%s95 + $0x730] sm:$0xff] %v102
        %334 = vst [vmem:[%s95 + $0x738] sm:$0xff] %v102
        %335 = vst [vmem:[%s95 + $0x740] sm:$0xff] %v102
        %336 = vst [vmem:[%s95 + $0x748] sm:$0xff] %v102
        %337 = vst [vmem:[%s95 + $0x750] sm:$0xff] %v102
        %338 = vst [vmem:[%s95 + $0x758] sm:$0xff] %v102
        %339 = vst [vmem:[%s95 + $0x760] sm:$0xff] %v102
        %340 = vst [vmem:[%s95 + $0x768] sm:$0xff] %v102
        %341 = vst [vmem:[%s95 + $0x770] sm:$0xff] %v102
        %342 = vst [vmem:[%s95 + $0x778] sm:$0xff] %v102
        %343 = vst [vmem:[%s95 + $0x780] sm:$0xff] %v102
        %344 = vst [vmem:[%s95 + $0x788] sm:$0xff] %v102
        %345 = vst [vmem:[%s95 + $0x790] sm:$0xff] %v102
        %346 = vst [vmem:[%s95 + $0x798] sm:$0xff] %v102
        %347 = vst [vmem:[%s95 + $0x7a0] sm:$0xff] %v102
        %348 = vst [vmem:[%s95 + $0x7a8] sm:$0xff] %v102
        %349 = vst [vmem:[%s95 + $0x7b0] sm:$0xff] %v102
        %350 = vst [vmem:[%s95 + $0x7b8] sm:$0xff] %v102
        %351 = vst [vmem:[%s95 + $0x7c0] sm:$0xff] %v102
        %352 = vst [vmem:[%s95 + $0x7c8] sm:$0xff] %v102
        %353 = vst [vmem:[%s95 + $0x7d0] sm:$0xff] %v102
        %354 = vst [vmem:[%s95 + $0x7d8] sm:$0xff] %v102
        %355 = vst [vmem:[%s95 + $0x7e0] sm:$0xff] %v102
        %356 = vst [vmem:[%s95 + $0x7e8] sm:$0xff] %v102
        %357 = vst [vmem:[%s95 + $0x7f0] sm:$0xff] %v102
        %358 = vst [vmem:[%s95 + $0x7f8] sm:$0xff] %v102
        %359 = vst [vmem:[%s95 + $0x800] sm:$0xff] %v102
        %360 = vst [vmem:[%s95 + $0x808] sm:$0xff] %v102
        %361 = vst [vmem:[%s95 + $0x810] sm:$0xff] %v102
        %362 = vst [vmem:[%s95 + $0x818] sm:$0xff] %v102
        %363 = vst [vmem:[%s95 + $0x820] sm:$0xff] %v102
        %364 = vst [vmem:[%s95 + $0x828] sm:$0xff] %v102
        %365 = vst [vmem:[%s95 + $0x830] sm:$0xff] %v102
        %366 = vst [vmem:[%s95 + $0x838] sm:$0xff] %v102
        %367 = vst [vmem:[%s95 + $0x840] sm:$0xff] %v102
        %368 = vst [vmem:[%s95 + $0x848] sm:$0xff] %v102
        %369 = vst [vmem:[%s95 + $0x850] sm:$0xff] %v102
        %370 = vst [vmem:[%s95 + $0x858] sm:$0xff] %v102
        %371 = vst [vmem:[%s95 + $0x860] sm:$0xff] %v102
        %372 = vst [vmem:[%s95 + $0x868] sm:$0xff] %v102
        %373 = vst [vmem:[%s95 + $0x870] sm:$0xff] %v102
        %374 = vst [vmem:[%s95 + $0x878] sm:$0xff] %v102
        %375 = vst [vmem:[%s95 + $0x880] sm:$0xff] %v102
        %376 = vst [vmem:[%s95 + $0x888] sm:$0xff] %v102
        %377 = vst [vmem:[%s95 + $0x890] sm:$0xff] %v102
        %378 = vst [vmem:[%s95 + $0x898] sm:$0xff] %v102
        %379 = vst [vmem:[%s95 + $0x8a0] sm:$0xff] %v102
        %380 = vst [vmem:[%s95 + $0x8a8] sm:$0xff] %v102
        %381 = vst [vmem:[%s95 + $0x8b0] sm:$0xff] %v102
        %382 = vst [vmem:[%s95 + $0x8b8] sm:$0xff] %v102
        %383 = vst [vmem:[%s95 + $0x8c0] sm:$0xff] %v102
        %384 = vst [vmem:[%s95 + $0x8c8] sm:$0xff] %v102
        %385 = vst [vmem:[%s95 + $0x8d0] sm:$0xff] %v102
        %386 = vst [vmem:[%s95 + $0x8d8] sm:$0xff] %v102
        %387 = vst [vmem:[%s95 + $0x8e0] sm:$0xff] %v102
        %388 = vst [vmem:[%s95 + $0x8e8] sm:$0xff] %v102
        %389 = vst [vmem:[%s95 + $0x8f0] sm:$0xff] %v102
        %390 = vst [vmem:[%s95 + $0x8f8] sm:$0xff] %v102
        %391 = vst [vmem:[%s95 + $0x900] sm:$0xff] %v102
        %392 = vst [vmem:[%s95 + $0x908] sm:$0xff] %v102
        %393 = vst [vmem:[%s95 + $0x910] sm:$0xff] %v102
        %394 = vst [vmem:[%s95 + $0x918] sm:$0xff] %v102
        %395 = vst [vmem:[%s95 + $0x920] sm:$0xff] %v102
        %396 = vst [vmem:[%s95 + $0x928] sm:$0xff] %v102
        %397 = vst [vmem:[%s95 + $0x930] sm:$0xff] %v102
        %398 = vst [vmem:[%s95 + $0x938] sm:$0xff] %v102
        %399 = vst [vmem:[%s95 + $0x940] sm:$0xff] %v102
        %400 = vst [vmem:[%s95 + $0x948] sm:$0xff] %v102
        %401 = vst [vmem:[%s95 + $0x950] sm:$0xff] %v102
        %402 = vst [vmem:[%s95 + $0x958] sm:$0xff] %v102
        %403 = vst [vmem:[%s95 + $0x960] sm:$0xff] %v102
        %404 = vst [vmem:[%s95 + $0x968] sm:$0xff] %v102
        %405 = vst [vmem:[%s95 + $0x970] sm:$0xff] %v102
        %406 = vst [vmem:[%s95 + $0x978] sm:$0xff] %v102
        %407 = vst [vmem:[%s95 + $0x980] sm:$0xff] %v102
        %408 = vst [vmem:[%s95 + $0x988] sm:$0xff] %v102
        %409 = vst [vmem:[%s95 + $0x990] sm:$0xff] %v102
        %410 = vst [vmem:[%s95 + $0x998] sm:$0xff] %v102
        %411 = vst [vmem:[%s95 + $0x9a0] sm:$0xff] %v102
        %412 = vst [vmem:[%s95 + $0x9a8] sm:$0xff] %v102
        %413 = vst [vmem:[%s95 + $0x9b0] sm:$0xff] %v102
        %414 = vst [vmem:[%s95 + $0x9b8] sm:$0xff] %v102
        %415 = vst [vmem:[%s95 + $0x9c0] sm:$0xff] %v102
        %416 = vst [vmem:[%s95 + $0x9c8] sm:$0xff] %v102
        %417 = vst [vmem:[%s95 + $0x9d0] sm:$0xff] %v102
        %418 = vst [vmem:[%s95 + $0x9d8] sm:$0xff] %v102
        %419 = vst [vmem:[%s95 + $0x9e0] sm:$0xff] %v102
        %420 = vst [vmem:[%s95 + $0x9e8] sm:$0xff] %v102
        %421 = vst [vmem:[%s95 + $0x9f0] sm:$0xff] %v102
        %422 = vst [vmem:[%s95 + $0x9f8] sm:$0xff] %v102
        %423 = vst [vmem:[%s95 + $0xa00] sm:$0xff] %v102
        %424 = vst [vmem:[%s95 + $0xa08] sm:$0xff] %v102
        %425 = vst [vmem:[%s95 + $0xa10] sm:$0xff] %v102
        %426 = vst [vmem:[%s95 + $0xa18] sm:$0xff] %v102
        %427 = vst [vmem:[%s95 + $0xa20] sm:$0xff] %v102
        %428 = vst [vmem:[%s95 + $0xa28] sm:$0xff] %v102
        %429 = vst [vmem:[%s95 + $0xa30] sm:$0xff] %v102
        %430 = vst [vmem:[%s95 + $0xa38] sm:$0xff] %v102
        %431 = vst [vmem:[%s95 + $0xa40] sm:$0xff] %v102
        %432 = vst [vmem:[%s95 + $0xa48] sm:$0xff] %v102
        %433 = vst [vmem:[%s95 + $0xa50] sm:$0xff] %v102
        %434 = vst [vmem:[%s95 + $0xa58] sm:$0xff] %v102
        %435 = vst [vmem:[%s95 + $0xa60] sm:$0xff] %v102
        %436 = vst [vmem:[%s95 + $0xa68] sm:$0xff] %v102
        %437 = vst [vmem:[%s95 + $0xa70] sm:$0xff] %v102
        %438 = vst [vmem:[%s95 + $0xa78] sm:$0xff] %v102
        %439 = vst [vmem:[%s95 + $0xa80] sm:$0xff] %v102
        %440 = vst [vmem:[%s95 + $0xa88] sm:$0xff] %v102
        %441 = vst [vmem:[%s95 + $0xa90] sm:$0xff] %v102
        %442 = vst [vmem:[%s95 + $0xa98] sm:$0xff] %v102
        %443 = vst [vmem:[%s95 + $0xaa0] sm:$0xff] %v102
        %444 = vst [vmem:[%s95 + $0xaa8] sm:$0xff] %v102
        %445 = vst [vmem:[%s95 + $0xab0] sm:$0xff] %v102
        %446 = vst [vmem:[%s95 + $0xab8] sm:$0xff] %v102
        %447 = vst [vmem:[%s95 + $0xac0] sm:$0xff] %v102
        %448 = vst [vmem:[%s95 + $0xac8] sm:$0xff] %v102
        %449 = vst [vmem:[%s95 + $0xad0] sm:$0xff] %v102
        %450 = vst [vmem:[%s95 + $0xad8] sm:$0xff] %v102
        %451 = vst [vmem:[%s95 + $0xae0] sm:$0xff] %v102
        %452 = vst [vmem:[%s95 + $0xae8] sm:$0xff] %v102
        %453 = vst [vmem:[%s95 + $0xaf0] sm:$0xff] %v102
        %454 = vst [vmem:[%s95 + $0xaf8] sm:$0xff] %v102
        %455 = vst [vmem:[%s95 + $0xb00] sm:$0xff] %v102
        %456 = vst [vmem:[%s95 + $0xb08] sm:$0xff] %v102
        %457 = vst [vmem:[%s95 + $0xb10] sm:$0xff] %v102
        %458 = vst [vmem:[%s95 + $0xb18] sm:$0xff] %v102
        %459 = vst [vmem:[%s95 + $0xb20] sm:$0xff] %v102
        %460 = vst [vmem:[%s95 + $0xb28] sm:$0xff] %v102
        %461 = vst [vmem:[%s95 + $0xb30] sm:$0xff] %v102
        %462 = vst [vmem:[%s95 + $0xb38] sm:$0xff] %v102
        %463 = vst [vmem:[%s95 + $0xb40] sm:$0xff] %v102
        %464 = vst [vmem:[%s95 + $0xb48] sm:$0xff] %v102
        %465 = vst [vmem:[%s95 + $0xb50] sm:$0xff] %v102
        %466 = vst [vmem:[%s95 + $0xb58] sm:$0xff] %v102
        %467 = vst [vmem:[%s95 + $0xb60] sm:$0xff] %v102
        %468 = vst [vmem:[%s95 + $0xb68] sm:$0xff] %v102
        %469 = vst [vmem:[%s95 + $0xb70] sm:$0xff] %v102
        %470 = vst [vmem:[%s95 + $0xb78] sm:$0xff] %v102
        %471 = vst [vmem:[%s95 + $0xb80] sm:$0xff] %v102
        %472 = vst [vmem:[%s95 + $0xb88] sm:$0xff] %v102
        %473 = vst [vmem:[%s95 + $0xb90] sm:$0xff] %v102
        %474 = vst [vmem:[%s95 + $0xb98] sm:$0xff] %v102
        %475 = vst [vmem:[%s95 + $0xba0] sm:$0xff] %v102
        %476 = vst [vmem:[%s95 + $0xba8] sm:$0xff] %v102
        %477 = vst [vmem:[%s95 + $0xbb0] sm:$0xff] %v102
        %478 = vst [vmem:[%s95 + $0xbb8] sm:$0xff] %v102
        %479 = vst [vmem:[%s95 + $0xbc0] sm:$0xff] %v102
        %480 = vst [vmem:[%s95 + $0xbc8] sm:$0xff] %v102
        %481 = vst [vmem:[%s95 + $0xbd0] sm:$0xff] %v102
        %s482 = sand.u32 %s45, 1
        %s483 = scalar_lea.sflag [#allocation4], %s482
        %s484 = sand.u32 %s45, 1
        %s485 = smul.addr %s484, 3032
        %s486 = scalar_lea.vmem [#allocation3], %s485
        // Predicated region
        $region25: #{tpu_custom_call.1} parent=23 // pred_check
          %p487 = pneg %p55
        $region26: #{tpu_custom_call.1} parent=23 // pred_check_branch
          %489 = sbr.rel (%p487) target = $region28
        $region27: #{tpu_custom_call.1} parent=23 // pred_region
          %s490 = smul.u32 379, %s16
          %s491 = ssub.s32 760, %s490
          %p492 = scmp.lt.s32.totalorder %s491, 379
          %s493 = scalar_select %p492, %s491, 379
          %s494 = smul.u32 128, %s493
          %s496 = ssub.s32 48512, %s494
          %497 = vsyncadd %s483, %s496
          %p498 = scmp.ne.s32.totalorder 0, %s494
          %s499 = smul.addr %s490, 128
          %s500 = scalar_lea.hbm %s1, %s499
          %s501 = smul.u32 8, %s493
          %s502 = sshll.u32 %s486, 4
          %s503 = int_to_ptr.vmem [resolvable:$true] %s502
          %s504 = sshll.u32 %s501, 4
          %508 = dma.vmem_to_hbm [thread:$0]  (%p498), %s503, %s504, %s500, %s483, 128, 128, 8
        $region28: #{tpu_custom_call.1} parent=23 // pred_fallthru
          _
      $region24: #{tpu_custom_call.1} parent=5 // pred_fallthru
        _
      %p509 = scmp.le.s32.totalorder 2, %s11
      // Predicated region
      $region29: #{tpu_custom_call.1} parent=5 // pred_check
        %p510 = pneg %p509
      $region30: #{tpu_custom_call.1} parent=5 // pred_check_branch
        %512 = sbr.rel (%p510) target = $region32
      $region31: #{tpu_custom_call.1} parent=5 // pred_region
        %s513 = ssub.s32 %s11, 2
        // Predicated region
        $region33: #{tpu_custom_call.1} parent=31 // pred_check
          %p514 = pneg %p61
        $region34: #{tpu_custom_call.1} parent=31 // pred_check_branch
          %516 = sbr.rel (%p514) target = $region36
        $region35: #{tpu_custom_call.1} parent=31 // pred_region
          %s517 = sand.u32 %s46, 1
          %s518 = scalar_lea.sflag [#allocation4], %s517
          %s519 = sand.u32 %s46, 1
          %s520 = smul.addr %s519, 3032
          %s521 = scalar_lea.vmem [#allocation3], %s520
          %522 = dma.done %s518, 48512
        $region36: #{tpu_custom_call.1} parent=31 // pred_fallthru
          _
      $region32: #{tpu_custom_call.1} parent=5 // pred_fallthru
        _
    $region6: #{tpu_custom_call.1} parent=1 // loop_footer
      %s15 = sadd.s32 1, %s11
    $region7: #{tpu_custom_call.1} parent=1 // loop_footer_branch
      %10 = sbr.rel target = $region3
    $region8: #{tpu_custom_call.1} parent=1 // loop_exit
      _
    %523 = vsyncpa [#allocation4], 1
    %s524 = scalar_lea.sflag [#allocation4], 1
    %525 = vsyncpa %s524, 1

</llo_original>
